<compile_context>
chip_gen: v7x
topology: tpu7x:2x2x1
jax: 0.10.0
libtpu: 0.0.40
codegen_flags: <defaults>
</compile_context>

<pallas_src>
import functools

import numpy as np
import jax
import jax.numpy as jnp
from jax import lax
from jax.experimental import pallas as pl
from jax.experimental.pallas import tpu as pltpu


def _round_up(x, m):
    return ((x + m - 1) // m) * m


@functools.lru_cache(maxsize=None)
def _vmem_limit_bytes():
    """Generation-aware scoped-VMEM budget.

    ~55% of physical VMEM: ~35 MiB on 64-MiB v7x, ~70 MiB on 128-MiB v5e/v6e.
    Falls back to a conservative 35 MiB if the hardware query is unavailable.
    """
    try:
        cap = int(pltpu.get_tpu_info().vmem_capacity_bytes)
    except Exception:
        cap = 64 * 1024 * 1024
    return max(32 * 1024 * 1024, min(int(cap * 0.55), 96 * 1024 * 1024))


# ---------------------------------------------------------------------------
# Pallas kernels
# ---------------------------------------------------------------------------
def _mm_kernel(a_ref, b_ref, s_ref, c_ref, o_ref, acc_ref, *, relu):
    """out = [relu]((a @ b) * s + c); accumulate over the K grid axis (f32)."""
    k = pl.program_id(2)

    @pl.when(k == 0)
    def _():
        acc_ref[...] = jnp.zeros_like(acc_ref)

    acc_ref[...] += jnp.dot(a_ref[...], b_ref[...],
                            preferred_element_type=jnp.float32)

    @pl.when(k == pl.num_programs(2) - 1)
    def _():
        r = acc_ref[...] * s_ref[...] + c_ref[...]
        if relu:
            r = jnp.maximum(r, 0.0)
        o_ref[...] = r.astype(o_ref.dtype)


_TM_CANDIDATES = (4096, 2048, 1024, 512, 256, 128, 64, 32, 16, 8)


def _choose_tiles(M, K, N, op_bytes, out_bytes, budget):
    """Pick (tm, tk, tn).

    Full-dim N block (no N padding, no post-slice), full-K block whenever the
    double-buffered working set fits the VMEM budget, and the largest M tile
    that fits (fewer grid steps -> less per-step overhead, bigger DMAs).
    """
    tn = N

    def ws(tm, tk):
        return (2 * tm * tk * op_bytes        # A, double-buffered
                + 2 * tk * tn * op_bytes      # B, double-buffered
                + 4 * tn * 4                  # scale + bias, double-buffered
                + 2 * tm * tn * out_bytes     # out, double-buffered
                + tm * tn * 4)                # f32 accumulator scratch

    m_cap = _round_up(M, 8)
    for tk in [K] + [t for t in (2048, 1024, 512, 256, 128) if t < K]:
        for tm in _TM_CANDIDATES:
            tm = min(tm, m_cap)
            if ws(tm, tk) <= budget:
                # Keep >=2 blocks along the parallel M axis: uses both v7x
                # TensorCores and lets input prefetch / output writeback
                # overlap compute instead of a single serialized grid step.
                if pl.cdiv(M, tm) == 1 and m_cap >= 16:
                    tm = _round_up(-(-M // 2), 8)
                return tm, tk, tn
    return 8, min(K, 128), tn


def matmul_scale_bias(a, b, scale, bias, *, relu, out_dtype=jnp.float32,
                      operand_dtype=jnp.bfloat16):
    """(M,K) @ (K,N) on the MXU (f32 accumulate), then per-column scale/bias
    and optional ReLU in f32, cast to `out_dtype` on store.

    M and N are never padded (pl.cdiv grid + masked boundary blocks); K is
    only zero-padded when it has to be tiled (never the case in this net)."""
    M, K = a.shape
    K2, N = b.shape
    assert K == K2
    vmem_limit = _vmem_limit_bytes()
    tm, tk, tn = _choose_tiles(M, K, N,
                               jnp.dtype(operand_dtype).itemsize,
                               jnp.dtype(out_dtype).itemsize,
                               int(vmem_limit * 0.65))

    a_p = a.astype(operand_dtype)
    b_p = b.astype(operand_dtype)
    Kp = K
    if tk != K:
        # K feeds the accumulation, so it must be explicitly zero-padded.
        Kp = _round_up(K, tk)
        a_p = jnp.pad(a_p, ((0, 0), (0, Kp - K)))
        b_p = jnp.pad(b_p, ((0, Kp - K), (0, 0)))
    s_p = scale.reshape(1, N).astype(jnp.float32)
    c_p = bias.reshape(1, N).astype(jnp.float32)

    return pl.pallas_call(
        functools.partial(_mm_kernel, relu=relu),
        out_shape=jax.ShapeDtypeStruct((M, N), out_dtype),
        grid_spec=pltpu.PrefetchScalarGridSpec(
            num_scalar_prefetch=0,
            grid=(pl.cdiv(M, tm), pl.cdiv(N, tn), Kp // tk),
            in_specs=[
                pl.BlockSpec((tm, tk), lambda i, j, k: (i, k)),
                pl.BlockSpec((tk, tn), lambda i, j, k: (k, j)),
                pl.BlockSpec((1, tn), lambda i, j, k: (0, j)),
                pl.BlockSpec((1, tn), lambda i, j, k: (0, j)),
            ],
            out_specs=pl.BlockSpec((tm, tn), lambda i, j, k: (i, j)),
            scratch_shapes=[pltpu.VMEM((tm, tn), jnp.float32)],
        ),
        compiler_params=pltpu.CompilerParams(
            dimension_semantics=("parallel", "parallel", "arbitrary"),
            vmem_limit_bytes=vmem_limit),
    )(a_p, b_p, s_p, c_p)


def _pool_kernel(x_ref, o_ref, *, k, stride, op):
    """k x k pooling of one NHWC image (row-tiled, separable reduce).

    Row stride is handled in-kernel (only the required output rows are read,
    reduced and stored); columns are produced at stride 1.  Max compares stay
    in the input dtype (exact); avg accumulates in f32."""
    _, Hp, Wp, C = x_ref.shape
    _, Ho, Wo1, _ = o_ref.shape
    tr = min(8, Ho)                       # output rows per inner-loop step
    nt = -(-Ho // tr)
    in_rows = (tr - 1) * stride + k

    def combine(acc, v):
        if acc is None:
            return v
        return jnp.maximum(acc, v) if op == "max" else acc + v

    def body(t, carry):
        oh = jnp.minimum(t * tr, Ho - tr)     # clamp last (overlapping) tile
        ih = oh * stride
        # reduce along W first (k shifted slabs of the input row window) ...
        rows = None
        for j in range(k):
            v = x_ref[0, pl.ds(ih, in_rows), pl.ds(j, Wo1), :]
            if op == "avg":
                v = v.astype(jnp.float32)
            rows = combine(rows, v)
        # ... then along H (cheap leading-dim picks of the partial result).
        if stride == 1:
            acc = None
            for i in range(k):
                acc = combine(acc, rows[i:i + tr])
            if op == "avg":                   # count_include_pad=True semantics
                acc = acc * (1.0 / (k * k))
            o_ref[0, pl.ds(oh, tr), :, :] = acc.astype(o_ref.dtype)
        else:
            for d in range(tr):               # strided output rows, direct store
                acc = None
                for i in range(k):
                    acc = combine(acc, rows[d * stride + i])
                if op == "avg":
                    acc = acc * (1.0 / (k * k))
                o_ref[0, oh + d, :, :] = acc.astype(o_ref.dtype)
        return carry

    lax.fori_loop(0, nt, body, 0)


def pool2d(x, k, stride, pad, op):
    """max / avg pooling (NHWC); avg matches count_include_pad=True."""
    if pad:
        # TODO(synk): the 1-pixel avg-pool border is still added by an XLA pad
        # (full-activation copy); folding it into the kernel via a zeroed VMEM
        # scratch would remove that round trip.
        x = jnp.pad(x, ((0, 0), (pad, pad), (pad, pad), (0, 0)))
    Bn, Hp, Wp, C = x.shape
    Ho = (Hp - k) // stride + 1
    Wo1 = Wp - k + 1
    y = pl.pallas_call(
        functools.partial(_pool_kernel, k=k, stride=stride, op=op),
        out_shape=jax.ShapeDtypeStruct((Bn, Ho, Wo1, C), x.dtype),
        grid=(Bn,),
        in_specs=[pl.BlockSpec((1, Hp, Wp, C), lambda b: (b, 0, 0, 0))],
        out_specs=pl.BlockSpec((1, Ho, Wo1, C), lambda b: (b, 0, 0, 0)),
        compiler_params=pltpu.CompilerParams(
            dimension_semantics=("parallel",),
            vmem_limit_bytes=_vmem_limit_bytes()),
    )(x)
    if stride > 1:
        # TODO(synk): column subsample of the (already row-strided) map is done
        # by XLA; an in-kernel strided (pl.ds stride=) read would remove this
        # last small copy.
        y = y[:, :, ::stride, :]
    return y


def _spatial_mean_kernel(x_ref, o_ref):
    o_ref[0] = jnp.mean(x_ref[0].astype(jnp.float32), axis=0, keepdims=True)


def spatial_mean(x):
    """(B, S, C) -> (B, C) mean over S; lane-dense (C on lanes) output."""
    Bn, S, C = x.shape
    out = pl.pallas_call(
        _spatial_mean_kernel,
        out_shape=jax.ShapeDtypeStruct((Bn, 1, C), jnp.float32),
        grid=(Bn,),
        in_specs=[pl.BlockSpec((1, S, C), lambda b: (b, 0, 0))],
        out_specs=pl.BlockSpec((1, 1, C), lambda b: (b, 0, 0)),
        compiler_params=pltpu.CompilerParams(
            dimension_semantics=("parallel",),
            vmem_limit_bytes=_vmem_limit_bytes()),
    )(x)
    return out.reshape(Bn, C)


# ---------------------------------------------------------------------------
# NN building blocks (glue: im2col / padding / reshapes; compute in Pallas)
# ---------------------------------------------------------------------------
def conv_bn_relu(x, p, stride=1, padding=(0, 0)):
    """BasicConv2d: conv(no bias) + folded eval-mode BatchNorm + ReLU. NHWC."""
    # TODO(synk): im2col is still materialized by XLA (in bf16); fully fusing
    # the tap loop into the matmul's A BlockSpec is left for a future version.
    w, scale, bias = p["w"], p["scale"], p["bias"]
    kh, kw, cin, cout = w.shape
    ph, pw = padding
    if ph or pw:
        x = jnp.pad(x, ((0, 0), (ph, ph), (pw, pw), (0, 0)))
    B, H, W, _ = x.shape
    Ho = (H - kh) // stride + 1
    Wo = (W - kw) // stride + 1
    if kh == 1 and kw == 1 and stride == 1:
        patches = x.reshape(B * H * W, cin)          # 1x1 conv: no im2col
    else:
        cols = []
        for i in range(kh):
            for j in range(kw):
                cols.append(x[:, i:i + (Ho - 1) * stride + 1:stride,
                              j:j + (Wo - 1) * stride + 1:stride, :])
        patches = jnp.concatenate(cols, axis=-1).reshape(B * Ho * Wo,
                                                         kh * kw * cin)
    out = matmul_scale_bias(patches, w.reshape(kh * kw * cin, cout),
                            scale, bias, relu=True, out_dtype=jnp.bfloat16)
    return out.reshape(B, Ho, Wo, cout)


# ---------------------------------------------------------------------------
# Deterministic synthetic parameters (Inception-v3 architecture)
# ---------------------------------------------------------------------------
class KeyGen:
    def __init__(self, seed):
        self._key = jax.random.PRNGKey(seed)

    def __call__(self):
        self._key, k = jax.random.split(self._key)
        return k


def make_basic(kg, cin, cout, ksize):
    kh, kw = ksize
    w = jax.random.normal(kg(), (kh, kw, cin, cout), jnp.float32)
    w = (w * np.sqrt(2.0 / (kh * kw * cin))).astype(jnp.bfloat16)
    # Folded BatchNorm2d(eps=1e-3), eval mode, gamma=1 beta=0 mean=0 var=1.
    scale = jnp.full((cout,), 1.0 / np.sqrt(1.0 + 1e-3), jnp.float32)
    bias = jnp.zeros((cout,), jnp.float32)
    return {"w": w, "scale": scale, "bias": bias}


def make_inception_a(kg, cin, pool_features):
    return {
        "b1x1": make_basic(kg, cin, 64, (1, 1)),
        "b5x5_1": make_basic(kg, cin, 48, (1, 1)),
        "b5x5_2": make_basic(kg, 48, 64, (5, 5)),
        "b3x3dbl_1": make_basic(kg, cin, 64, (1, 1)),
        "b3x3dbl_2": make_basic(kg, 64, 96, (3, 3)),
        "b3x3dbl_3": make_basic(kg, 96, 96, (3, 3)),
        "bpool": make_basic(kg, cin, pool_features, (1, 1)),
    }


def make_inception_b(kg, cin):
    return {
        "b3x3": make_basic(kg, cin, 384, (3, 3)),
        "b3x3dbl_1": make_basic(kg, cin, 64, (1, 1)),
        "b3x3dbl_2": make_basic(kg, 64, 96, (3, 3)),
        "b3x3dbl_3": make_basic(kg, 96, 96, (3, 3)),
    }


def make_inception_c(kg, cin, c7):
    return {
        "b1x1": make_basic(kg, cin, 192, (1, 1)),
        "b7x7_1": make_basic(kg, cin, c7, (1, 1)),
        "b7x7_2": make_basic(kg, c7, c7, (1, 7)),
        "b7x7_3": make_basic(kg, c7, 192, (7, 1)),
        "b7x7dbl_1": make_basic(kg, cin, c7, (1, 1)),
        "b7x7dbl_2": make_basic(kg, c7, c7, (7, 1)),
        "b7x7dbl_3": make_basic(kg, c7, c7, (1, 7)),
        "b7x7dbl_4": make_basic(kg, c7, c7, (7, 1)),
        "b7x7dbl_5": make_basic(kg, c7, 192, (1, 7)),
        "bpool": make_basic(kg, cin, 192, (1, 1)),
    }


def make_inception_d(kg, cin):
    return {
        "b3x3_1": make_basic(kg, cin, 192, (1, 1)),
        "b3x3_2": make_basic(kg, 192, 320, (3, 3)),
        "b7x7x3_1": make_basic(kg, cin, 192, (1, 1)),
        "b7x7x3_2": make_basic(kg, 192, 192, (1, 7)),
        "b7x7x3_3": make_basic(kg, 192, 192, (7, 1)),
        "b7x7x3_4": make_basic(kg, 192, 192, (3, 3)),
    }


def make_inception_e(kg, cin):
    return {
        "b1x1": make_basic(kg, cin, 320, (1, 1)),
        "b3x3_1": make_basic(kg, cin, 384, (1, 1)),
        "b3x3_2a": make_basic(kg, 384, 384, (1, 3)),
        "b3x3_2b": make_basic(kg, 384, 384, (3, 1)),
        "b3x3dbl_1": make_basic(kg, cin, 448, (1, 1)),
        "b3x3dbl_2": make_basic(kg, 448, 384, (3, 3)),
        "b3x3dbl_3a": make_basic(kg, 384, 384, (1, 3)),
        "b3x3dbl_3b": make_basic(kg, 384, 384, (3, 1)),
        "bpool": make_basic(kg, cin, 192, (1, 1)),
    }


def build_inception_params(seed=0):
    kg = KeyGen(seed)
    P = {
        "Conv2d_1a_3x3": make_basic(kg, 3, 32, (3, 3)),
        "Conv2d_2a_3x3": make_basic(kg, 32, 32, (3, 3)),
        "Conv2d_2b_3x3": make_basic(kg, 32, 64, (3, 3)),
        "Conv2d_3b_1x1": make_basic(kg, 64, 80, (1, 1)),
        "Conv2d_4a_3x3": make_basic(kg, 80, 192, (3, 3)),
        "Mixed_5b": make_inception_a(kg, 192, 32),
        "Mixed_5c": make_inception_a(kg, 256, 64),
        "Mixed_5d": make_inception_a(kg, 288, 64),
        "Mixed_6a": make_inception_b(kg, 288),
        "Mixed_6b": make_inception_c(kg, 768, 128),
        "Mixed_6c": make_inception_c(kg, 768, 160),
        "Mixed_6d": make_inception_c(kg, 768, 160),
        "Mixed_6e": make_inception_c(kg, 768, 192),
        "Mixed_7a": make_inception_d(kg, 768),
        "Mixed_7b": make_inception_e(kg, 1280),
        "Mixed_7c": make_inception_e(kg, 2048),
    }
    wfc = (jax.random.normal(kg(), (2048, 1000), jnp.float32)
           * np.sqrt(1.0 / 2048)).astype(jnp.bfloat16)
    bfc = 0.01 * jax.random.normal(kg(), (1000,), jnp.float32)
    P["fc"] = {"w": wfc, "b": bfc}
    return P


# ---------------------------------------------------------------------------
# Inception blocks (apply)
# ---------------------------------------------------------------------------
def inception_a(x, p):
    b1 = conv_bn_relu(x, p["b1x1"])
    b5 = conv_bn_relu(x, p["b5x5_1"])
    b5 = conv_bn_relu(b5, p["b5x5_2"], padding=(2, 2))
    bd = conv_bn_relu(x, p["b3x3dbl_1"])
    bd = conv_bn_relu(bd, p["b3x3dbl_2"], padding=(1, 1))
    bd = conv_bn_relu(bd, p["b3x3dbl_3"], padding=(1, 1))
    bp = pool2d(x, 3, 1, 1, "avg")
    bp = conv_bn_relu(bp, p["bpool"])
    return jnp.concatenate([b1, b5, bd, bp], axis=-1)


def inception_b(x, p):
    b3 = conv_bn_relu(x, p["b3x3"], stride=2)
    bd = conv_bn_relu(x, p["b3x3dbl_1"])
    bd = conv_bn_relu(bd, p["b3x3dbl_2"], padding=(1, 1))
    bd = conv_bn_relu(bd, p["b3x3dbl_3"], stride=2)
    bp = pool2d(x, 3, 2, 0, "max")
    return jnp.concatenate([b3, bd, bp], axis=-1)


def inception_c(x, p):
    b1 = conv_bn_relu(x, p["b1x1"])
    b7 = conv_bn_relu(x, p["b7x7_1"])
    b7 = conv_bn_relu(b7, p["b7x7_2"], padding=(0, 3))
    b7 = conv_bn_relu(b7, p["b7x7_3"], padding=(3, 0))
    bd = conv_bn_relu(x, p["b7x7dbl_1"])
    bd = conv_bn_relu(bd, p["b7x7dbl_2"], padding=(3, 0))
    bd = conv_bn_relu(bd, p["b7x7dbl_3"], padding=(0, 3))
    bd = conv_bn_relu(bd, p["b7x7dbl_4"], padding=(3, 0))
    bd = conv_bn_relu(bd, p["b7x7dbl_5"], padding=(0, 3))
    bp = pool2d(x, 3, 1, 1, "avg")
    bp = conv_bn_relu(bp, p["bpool"])
    return jnp.concatenate([b1, b7, bd, bp], axis=-1)


def inception_d(x, p):
    b3 = conv_bn_relu(x, p["b3x3_1"])
    b3 = conv_bn_relu(b3, p["b3x3_2"], stride=2)
    b7 = conv_bn_relu(x, p["b7x7x3_1"])
    b7 = conv_bn_relu(b7, p["b7x7x3_2"], padding=(0, 3))
    b7 = conv_bn_relu(b7, p["b7x7x3_3"], padding=(3, 0))
    b7 = conv_bn_relu(b7, p["b7x7x3_4"], stride=2)
    bp = pool2d(x, 3, 2, 0, "max")
    return jnp.concatenate([b3, b7, bp], axis=-1)


def inception_e(x, p):
    b1 = conv_bn_relu(x, p["b1x1"])
    b3 = conv_bn_relu(x, p["b3x3_1"])
    b3 = jnp.concatenate([conv_bn_relu(b3, p["b3x3_2a"], padding=(0, 1)),
                          conv_bn_relu(b3, p["b3x3_2b"], padding=(1, 0))], axis=-1)
    bd = conv_bn_relu(x, p["b3x3dbl_1"])
    bd = conv_bn_relu(bd, p["b3x3dbl_2"], padding=(1, 1))
    bd = jnp.concatenate([conv_bn_relu(bd, p["b3x3dbl_3a"], padding=(0, 1)),
                          conv_bn_relu(bd, p["b3x3dbl_3b"], padding=(1, 0))], axis=-1)
    bp = pool2d(x, 3, 1, 1, "avg")
    bp = conv_bn_relu(bp, p["bpool"])
    return jnp.concatenate([b1, b3, bd, bp], axis=-1)


# ---------------------------------------------------------------------------
# WrapInception.forward
# ---------------------------------------------------------------------------
def interp_matrix(out_size, in_size):
    """Row-interpolation matrix for bilinear, align_corners=True (rows sum to 1)."""
    if in_size == 1:
        return jnp.ones((out_size, 1), jnp.float32)
    pos = jnp.arange(out_size, dtype=jnp.float32) * (in_size - 1) / (out_size - 1)
    lo = jnp.clip(jnp.floor(pos).astype(jnp.int32), 0, in_size - 2)
    frac = pos - lo.astype(jnp.float32)
    m = jnp.zeros((out_size, in_size), jnp.float32)
    rows = jnp.arange(out_size)
    m = m.at[rows, lo].set(1.0 - frac)
    m = m.at[rows, lo + 1].add(frac)
    return m


def _fold_input_norm(p):
    """Fold (x+1)/2 then (x-mean)/std into Conv2d_1a_3x3's weight and bias.

    Exact: the per-channel affine commutes with bilinear align_corners resize
    (interp weights sum to 1) and Conv2d_1a has no zero padding, so
    conv(a*x+b) == conv_{W*a}(x) + sum(W*b), absorbed into the BN-folded bias.
    """
    mean = jnp.asarray([0.485, 0.456, 0.406], jnp.float32)
    std = jnp.asarray([0.229, 0.224, 0.225], jnp.float32)
    a = 0.5 / std
    b = (0.5 - mean) / std
    w = p["w"].astype(jnp.float32)                       # (3, 3, 3, 32)
    w_folded = (w * a[None, None, :, None]).astype(jnp.bfloat16)
    extra = jnp.einsum("hwio,i->o", w, b)                # (32,)
    bias = p["bias"] + p["scale"] * extra
    return {"w": w_folded, "scale": p["scale"], "bias": bias}


def wrap_inception_forward(x, params):
    """x: (B, 3, H, W) in [-1, 1]. Returns (pool (B,2048), logits (B,1000))."""
    B, C, H, W = x.shape
    assert C == 3
    P = params
    conv1 = _fold_input_norm(P["Conv2d_1a_3x3"])         # normalization folded

    # bilinear resize to 299x299 (align_corners=True) via two Pallas matmuls,
    # run in f32 for fidelity (tiny matmuls; negligible cost).
    if H != 299 or W != 299:
        Ry = interp_matrix(299, H)                       # (299, H)
        Cx = interp_matrix(299, W)                       # (299, W)
        xr = x.reshape(B * C, H, W)
        t = matmul_scale_bias(Ry, xr.transpose(1, 0, 2).reshape(H, B * C * W),
                              jnp.ones((B * C * W,), jnp.float32),
                              jnp.zeros((B * C * W,), jnp.float32),
                              relu=False, out_dtype=jnp.float32,
                              operand_dtype=jnp.float32)
        t = t.reshape(299, B * C, W).transpose(1, 0, 2).reshape(B * C * 299, W)
        xr = matmul_scale_bias(t, Cx.T,
                               jnp.ones((299,), jnp.float32),
                               jnp.zeros((299,), jnp.float32),
                               relu=False, out_dtype=jnp.float32,
                               operand_dtype=jnp.float32)
        xh = xr.reshape(B, C, 299, 299)
    else:
        xh = x
    x = jnp.transpose(xh, (0, 2, 3, 1)).astype(jnp.bfloat16)   # NCHW -> NHWC

    x = conv_bn_relu(x, conv1, stride=2)
    x = conv_bn_relu(x, P["Conv2d_2a_3x3"])
    x = conv_bn_relu(x, P["Conv2d_2b_3x3"], padding=(1, 1))
    x = pool2d(x, 3, 2, 0, "max")
    x = conv_bn_relu(x, P["Conv2d_3b_1x1"])
    x = conv_bn_relu(x, P["Conv2d_4a_3x3"])
    x = pool2d(x, 3, 2, 0, "max")
    x = inception_a(x, P["Mixed_5b"])
    x = inception_a(x, P["Mixed_5c"])
    x = inception_a(x, P["Mixed_5d"])
    x = inception_b(x, P["Mixed_6a"])
    x = inception_c(x, P["Mixed_6b"])
    x = inception_c(x, P["Mixed_6c"])
    x = inception_c(x, P["Mixed_6d"])
    x = inception_c(x, P["Mixed_6e"])
    x = inception_d(x, P["Mixed_7a"])
    x = inception_e(x, P["Mixed_7b"])
    x = inception_e(x, P["Mixed_7c"])

    # global spatial mean -> (B, 2048), lane-dense (channels on lanes), f32
    B2, H2, W2, C2 = x.shape
    pool = spatial_mean(x.reshape(B2, H2 * W2, C2))

    # dropout(training=False) is identity; fc = Linear(2048, 1000) in f32
    logits = matmul_scale_bias(pool, P["fc"]["w"],
                               jnp.ones((1000,), jnp.float32), P["fc"]["b"],
                               relu=False, out_dtype=jnp.float32,
                               operand_dtype=jnp.float32)
    return pool, logits


if __name__ == "__main__":
    params = build_inception_params(seed=0)
    key = jax.random.PRNGKey(0)
    x = jax.random.uniform(key, (2, 3, 16, 16), jnp.float32,
                           minval=-1.0, maxval=1.0)
    pool, logits = wrap_inception_forward(x, params)
    pool, logits = jax.block_until_ready((pool, logits))
    assert pool.shape == (2, 2048) and pool.dtype == jnp.float32
    assert logits.shape == (2, 1000) and logits.dtype == jnp.float32
    assert bool(jnp.all(jnp.isfinite(pool))) and bool(jnp.all(jnp.isfinite(logits)))
    print("KERNEL_OK")
</pallas_src>

<mosaic_0001>
module attributes {stable_mosaic.version = 11 : i64} {
  func.func @_mm_kernel(%arg0: i32, %arg1: i32, %arg2: i32, %arg3: memref<152x16xf32, #tpu.memory_space<vmem>>, %arg4: memref<16x96xf32, #tpu.memory_space<vmem>>, %arg5: memref<1x96xf32, #tpu.memory_space<vmem>>, %arg6: memref<1x96xf32, #tpu.memory_space<vmem>>, %arg7: memref<152x96xf32, #tpu.memory_space<vmem>>, %arg8: memref<152x96xf32, #tpu.memory_space<vmem>>) attributes {dimension_semantics = [#tpu.dimension_semantics<parallel>, #tpu.dimension_semantics<parallel>, #tpu.dimension_semantics<arbitrary>], iteration_bounds = array<i64: 2, 1, 1>, scalar_prefetch = 0 : i64, scratch_operands = 1 : i64, tpu.core_type = #tpu.core_type<tc>, window_params = [{transform_indices = @transform_0, window_bounds = array<i64: 152, 16>}, {transform_indices = @transform_1, window_bounds = array<i64: 16, 96>}, {transform_indices = @transform_2, window_bounds = array<i64: 1, 96>}, {transform_indices = @transform_3, window_bounds = array<i64: 1, 96>}, {transform_indices = @transform_4, window_bounds = array<i64: 152, 96>}]} {
    %c0_i32 = arith.constant 0 : i32
    %0 = arith.cmpi eq, %arg2, %c0_i32 : i32
    %1 = arith.extui %0 : i1 to i32
    %c0_i32_0 = arith.constant 0 : i32
    %2 = arith.cmpi ne, %1, %c0_i32_0 : i32
    scf.if %2 {
      %cst_10 = arith.constant 0.000000e+00 : f32
      %12 = vector.broadcast %cst_10 : f32 to vector<152x96xf32>
      %c0_11 = arith.constant 0 : index
      %c0_12 = arith.constant 0 : index
      %13 = vector.load %arg8[%c0_11, %c0_12] : memref<152x96xf32, #tpu.memory_space<vmem>>, vector<152x96xf32>
      tpu.vector_store %arg8[%c0_11, %c0_12], %12 {strides = array<i32>} : memref<152x96xf32, #tpu.memory_space<vmem>>, vector<152x96xf32>,
    } else {
    }
    %c0 = arith.constant 0 : index
    %c0_1 = arith.constant 0 : index
    %3 = vector.load %arg8[%c0, %c0_1] : memref<152x96xf32, #tpu.memory_space<vmem>>, vector<152x96xf32>
    %c0_2 = arith.constant 0 : index
    %c0_3 = arith.constant 0 : index
    %4 = vector.load %arg3[%c0_2, %c0_3] : memref<152x16xf32, #tpu.memory_space<vmem>>, vector<152x16xf32>
    %c0_4 = arith.constant 0 : index
    %c0_5 = arith.constant 0 : index
    %5 = vector.load %arg4[%c0_4, %c0_5] : memref<16x96xf32, #tpu.memory_space<vmem>>, vector<16x96xf32>
    %cst = arith.constant dense<0.000000e+00> : vector<152x96xf32>
    %6 = tpu.matmul %4, %5, %cst {dimension_numbers = #tpu.dot_dimension_numbers<[1], [0], [0], [1], [0, 0, 1, 1], [], []>} : vector<152x16xf32>, vector<16x96xf32>, vector<152x96xf32> -> vector<152x96xf32>
    %7 = arith.addf %3, %6 : vector<152x96xf32>
    %c0_6 = arith.constant 0 : index
    %c0_7 = arith.constant 0 : index
    %8 = vector.load %arg8[%c0_6, %c0_7] : memref<152x96xf32, #tpu.memory_space<vmem>>, vector<152x96xf32>
    tpu.vector_store %arg8[%c0_6, %c0_7], %7 {strides = array<i32>} : memref<152x96xf32, #tpu.memory_space<vmem>>, vector<152x96xf32>,
    %c0_i32_8 = arith.constant 0 : i32
    %9 = arith.cmpi eq, %arg2, %c0_i32_8 : i32
    %10 = arith.extui %9 : i1 to i32
    %c0_i32_9 = arith.constant 0 : i32
    %11 = arith.cmpi ne, %10, %c0_i32_9 : i32
    scf.if %11 {
      %c0_10 = arith.constant 0 : index
      %c0_11 = arith.constant 0 : index
      %12 = vector.load %arg8[%c0_10, %c0_11] : memref<152x96xf32, #tpu.memory_space<vmem>>, vector<152x96xf32>
      %c0_12 = arith.constant 0 : index
      %c0_13 = arith.constant 0 : index
      %13 = vector.load %arg5[%c0_12, %c0_13] : memref<1x96xf32, #tpu.memory_space<vmem>>, vector<1x96xf32>
      %14 = vector.broadcast %13 : vector<1x96xf32> to vector<152x96xf32>
      %15 = arith.mulf %12, %14 : vector<152x96xf32>
      %c0_14 = arith.constant 0 : index
      %c0_15 = arith.constant 0 : index
      %16 = vector.load %arg6[%c0_14, %c0_15] : memref<1x96xf32, #tpu.memory_space<vmem>>, vector<1x96xf32>
      %17 = vector.broadcast %16 : vector<1x96xf32> to vector<152x96xf32>
      %18 = arith.addf %15, %17 : vector<152x96xf32>
      %c0_16 = arith.constant 0 : index
      %c0_17 = arith.constant 0 : index
      %19 = vector.load %arg7[%c0_16, %c0_17] : memref<152x96xf32, #tpu.memory_space<vmem>>, vector<152x96xf32>
      tpu.vector_store %arg7[%c0_16, %c0_17], %18 {strides = array<i32>} : memref<152x96xf32, #tpu.memory_space<vmem>>, vector<152x96xf32>,
    } else {
    }
    return
  }
  func.func @transform_0(%arg0: i32, %arg1: i32, %arg2: i32) -> (i32, i32) {
    %c0_i32 = arith.constant 0 : i32
    return %arg0, %arg2 : i32, i32
  }
  func.func @transform_1(%arg0: i32, %arg1: i32, %arg2: i32) -> (i32, i32) {
    %c0_i32 = arith.constant 0 : i32
    return %arg2, %arg1 : i32, i32
  }
  func.func @transform_2(%arg0: i32, %arg1: i32, %arg2: i32) -> (i32, i32) {
    %c0_i32 = arith.constant 0 : i32
    %c0_i32_0 = arith.constant 0 : i32
    return %c0_i32, %arg1 : i32, i32
  }
  func.func @transform_3(%arg0: i32, %arg1: i32, %arg2: i32) -> (i32, i32) {
    %c0_i32 = arith.constant 0 : i32
    %c0_i32_0 = arith.constant 0 : i32
    return %c0_i32, %arg1 : i32, i32
  }
  func.func @transform_4(%arg0: i32, %arg1: i32, %arg2: i32) -> (i32, i32) {
    %c0_i32 = arith.constant 0 : i32
    return %arg0, %arg1 : i32, i32
  }
}

</mosaic_0001>

<llo_original>
// kernel: tpu_custom_call.1
$region0: #{tpu_custom_call.1}
  #allocation0 [shape = 'u32[]', space=smem, size = 0x4, offset = 0x4, fixed_abs, tag = 'smem constant byte address 0x4 - core index']
  #allocation1 [shape = 'u32[144,128]{1,0:T(1,128)}', space=vmem, size = 0x12000, scoped, tag = 'internal scratch']
  #allocation2 [shape = 'f32[152,96]{1,0:T(8,128)}', space=vmem, size = 0x13000, scoped, tag = 'scratch operand']
  %s0 = inlined_call_operand.vmem [shape: f32[299,16], index: 0, kind: input, shape index: {}]
  %s1 = inlined_call_operand.vmem [shape: f32[16,96], index: 1, kind: input, shape index: {}]
  %s2 = inlined_call_operand.vmem [shape: f32[1,96], index: 2, kind: input, shape index: {}]
  %s3 = inlined_call_operand.vmem [shape: f32[1,96], index: 3, kind: input, shape index: {}]
  %s4 = inlined_call_operand.vmem [shape: f32[299,96], index: 4, kind: output, shape index: {}]
  %s5 = sld [smem:[#allocation0]]
  $region57: #{tpu_custom_call.1} parent=0
    _
  %s7 = ssub.s32 1, %s5
  %s8 = scalar_select 0, %s7, %s5
  loop: start=0, step=1, limit=4
  $region2: #{tpu_custom_call.1} parent=0 // loop_pre_header
    _
  $region3: #{tpu_custom_call.1} parent=0 // loop_header
    %s10 = sphi 0, %s14
    %p11 = scmp.ge.s32.totalorder %s10, 4
    %s17 = sphi 0, %s36
    %s18 = sphi 0, %s32
    %s19 = sphi 0, %s28
    %s20 = sphi 0, %s17
    %s21 = sphi 0, %s18
    %s22 = sphi 0, %s19
    %s23 = sphi 0, %s20
    %s24 = sphi 0, %s21
    %s25 = sphi 0, %s22
    %s41 = sphi 0, %s43
    %s44 = sphi 0, %s41
    %s45 = sphi 0, %s44
    %s61 = sphi 0, %s45
    %s69 = sphi 0, %s71
    %s72 = sphi 0, %s69
    %s73 = sphi 0, %s72
    %s89 = sphi 0, %s73
    %s95 = sphi 0, %s97
    %s98 = sphi 0, %s95
    %s99 = sphi 0, %s98
    %s115 = sphi 0, %s99
    %s121 = sphi 0, %s123
    %s124 = sphi 0, %s121
    %s125 = sphi 0, %s124
    %s141 = sphi 0, %s125
    %s149 = sphi 0, %s151
    %s152 = sphi 0, %s149
    %s153 = sphi 0, %s152
    %s169 = sphi 0, %s153
  $region4: #{tpu_custom_call.1} parent=0 // loop_header_branch
    %13 = sbr.rel (%p11) target = $region8
  $region5: #{tpu_custom_call.1} parent=0 // loop_body
    %s15 = ssub.s32 %s10, 1
    %s16 = ssub.s32 %s10, 2
    %s26 = sadd.s32 1, %s19
    %p27 = scmp.ge.s32.totalorder %s26, 1
    %s28 = scalar_select %p27, 0, %s26
    %s29 = sadd.s32 1, %s18
    %s30 = scalar_select %p27, %s29, %s18
    %p31 = scmp.ge.s32.totalorder %s30, 1
    %s32 = scalar_select %p31, 0, %s30
    %s33 = sadd.s32 1, %s17
    %s34 = scalar_select %p31, %s33, %s17
    %p35 = scmp.ge.s32.totalorder %s34, 2
    %s36 = scalar_select %p35, 0, %s34
    %s37 = ssub.s32 %s17, %s36
    %s38 = ssub.s32 %s19, %s28
    %s39 = sor.u32 %s37, %s38
    %p40 = scmp.eq.s32.totalorder %s39, 0
    %s42 = sadd.s32 %s41, 1
    %s43 = scalar_select %p40, %s41, %s42
    %p46 = pneg %p40
    %p47 = scmp.eq.s32.totalorder %s10, 1
    %p48 = por %p46, %p47
    %p49 = scmp.ne.s32.totalorder %s41, %s44
    %p50 = scmp.eq.s32.totalorder %s10, 0
    %p51 = por %p49, %p50
    %p52 = scmp.ne.s32.totalorder %s41, %s44
    %p53 = scmp.eq.s32.totalorder %s15, 1
    %p54 = por %p52, %p53
    %p55 = scmp.ne.s32.totalorder %s44, %s45
    %p56 = scmp.eq.s32.totalorder %s15, 0
    %p57 = por %p55, %p56
    %p58 = scmp.ne.s32.totalorder %s44, %s45
    %p59 = scmp.eq.s32.totalorder %s16, 1
    %p60 = por %p58, %p59
    %p62 = scmp.ne.s32.totalorder %s45, %s61
    %p63 = scmp.eq.s32.totalorder %s16, 0
    %p64 = por %p62, %p63
    %s65 = ssub.s32 %s19, %s28
    %s66 = ssub.s32 %s18, %s32
    %s67 = sor.u32 %s65, %s66
    %p68 = scmp.eq.s32.totalorder %s67, 0
    %s70 = sadd.s32 %s69, 1
    %s71 = scalar_select %p68, %s69, %s70
    %p74 = pneg %p68
    %p75 = scmp.eq.s32.totalorder %s10, 1
    %p76 = por %p74, %p75
    %p77 = scmp.ne.s32.totalorder %s69, %s72
    %p78 = scmp.eq.s32.totalorder %s10, 0
    %p79 = por %p77, %p78
    %p80 = scmp.ne.s32.totalorder %s69, %s72
    %p81 = scmp.eq.s32.totalorder %s15, 1
    %p82 = por %p80, %p81
    %p83 = scmp.ne.s32.totalorder %s72, %s73
    %p84 = scmp.eq.s32.totalorder %s15, 0
    %p85 = por %p83, %p84
    %p86 = scmp.ne.s32.totalorder %s72, %s73
    %p87 = scmp.eq.s32.totalorder %s16, 1
    %p88 = por %p86, %p87
    %p90 = scmp.ne.s32.totalorder %s73, %s89
    %p91 = scmp.eq.s32.totalorder %s16, 0
    %p92 = por %p90, %p91
    %s93 = ssub.s32 %s18, %s32
    %p94 = scmp.eq.s32.totalorder %s93, 0
    %s96 = sadd.s32 %s95, 1
    %s97 = scalar_select %p94, %s95, %s96
    %p100 = pneg %p94
    %p101 = scmp.eq.s32.totalorder %s10, 1
    %p102 = por %p100, %p101
    %p103 = scmp.ne.s32.totalorder %s95, %s98
    %p104 = scmp.eq.s32.totalorder %s10, 0
    %p105 = por %p103, %p104
    %p106 = scmp.ne.s32.totalorder %s95, %s98
    %p107 = scmp.eq.s32.totalorder %s15, 1
    %p108 = por %p106, %p107
    %p109 = scmp.ne.s32.totalorder %s98, %s99
    %p110 = scmp.eq.s32.totalorder %s15, 0
    %p111 = por %p109, %p110
    %p112 = scmp.ne.s32.totalorder %s98, %s99
    %p113 = scmp.eq.s32.totalorder %s16, 1
    %p114 = por %p112, %p113
    %p116 = scmp.ne.s32.totalorder %s99, %s115
    %p117 = scmp.eq.s32.totalorder %s16, 0
    %p118 = por %p116, %p117
    %s119 = ssub.s32 %s18, %s32
    %p120 = scmp.eq.s32.totalorder %s119, 0
    %s122 = sadd.s32 %s121, 1
    %s123 = scalar_select %p120, %s121, %s122
    %p126 = pneg %p120
    %p127 = scmp.eq.s32.totalorder %s10, 1
    %p128 = por %p126, %p127
    %p129 = scmp.ne.s32.totalorder %s121, %s124
    %p130 = scmp.eq.s32.totalorder %s10, 0
    %p131 = por %p129, %p130
    %p132 = scmp.ne.s32.totalorder %s121, %s124
    %p133 = scmp.eq.s32.totalorder %s15, 1
    %p134 = por %p132, %p133
    %p135 = scmp.ne.s32.totalorder %s124, %s125
    %p136 = scmp.eq.s32.totalorder %s15, 0
    %p137 = por %p135, %p136
    %p138 = scmp.ne.s32.totalorder %s124, %s125
    %p139 = scmp.eq.s32.totalorder %s16, 1
    %p140 = por %p138, %p139
    %p142 = scmp.ne.s32.totalorder %s125, %s141
    %p143 = scmp.eq.s32.totalorder %s16, 0
    %p144 = por %p142, %p143
    %s145 = ssub.s32 %s17, %s36
    %s146 = ssub.s32 %s18, %s32
    %s147 = sor.u32 %s145, %s146
    %p148 = scmp.eq.s32.totalorder %s147, 0
    %s150 = sadd.s32 %s149, 1
    %s151 = scalar_select %p148, %s149, %s150
    %p154 = pneg %p148
    %p155 = scmp.eq.s32.totalorder %s10, 1
    %p156 = por %p154, %p155
    %p157 = scmp.ne.s32.totalorder %s149, %s152
    %p158 = scmp.eq.s32.totalorder %s10, 0
    %p159 = por %p157, %p158
    %p160 = scmp.ne.s32.totalorder %s149, %s152
    %p161 = scmp.eq.s32.totalorder %s15, 1
    %p162 = por %p160, %p161
    %p163 = scmp.ne.s32.totalorder %s152, %s153
    %p164 = scmp.eq.s32.totalorder %s15, 0
    %p165 = por %p163, %p164
    %p166 = scmp.ne.s32.totalorder %s152, %s153
    %p167 = scmp.eq.s32.totalorder %s16, 1
    %p168 = por %p166, %p167
    %p170 = scmp.ne.s32.totalorder %s153, %s169
    %p171 = scmp.eq.s32.totalorder %s16, 0
    %p172 = por %p170, %p171
    %p173 = scmp.le.s32.totalorder 1, %s10
    %p174 = scmp.lt.s32.totalorder %s10, 3
    %p175 = pnand %p173, %p174
    %p176 = pneg %p175
    // Predicated region
    $region9: #{tpu_custom_call.1} parent=5 // pred_check
      _
    $region10: #{tpu_custom_call.1} parent=5 // pred_check_branch
      %178 = sbr.rel (%p175) target = $region12
    $region11: #{tpu_custom_call.1} parent=5 // pred_region
      %s179 = ssub.s32 %s10, 1
      // Predicated region
      $region13: #{tpu_custom_call.1} parent=11 // pred_check
        %p180 = pneg %p85
      $region14: #{tpu_custom_call.1} parent=11 // pred_check_branch
        %182 = sbr.rel (%p180) target = $region16
      $region15: #{tpu_custom_call.1} parent=11 // pred_region
        %s183 = smul.u32 2, %s22
        %p184 = scmp.lt.s32.totalorder %s183, 1
        %s185 = scalar_select %p184, %s183, 1
        %p186 = scmp.lt.s32.totalorder %s21, 0
        %s187 = scalar_select %p186, %s21, 0
        %s188 = sadd.s32 %s187, %s185
        %s189 = smul.addr %s188, 8
        %s190 = scalar_lea.vmem %s1, %s189
        %s191 = smul.u32 2, %s22
      $region16: #{tpu_custom_call.1} parent=11 // pred_fallthru
        _
      // Predicated region
      $region17: #{tpu_custom_call.1} parent=11 // pred_check
        %p192 = pneg %p111
      $region18: #{tpu_custom_call.1} parent=11 // pred_check_branch
        %194 = sbr.rel (%p192) target = $region20
      $region19: #{tpu_custom_call.1} parent=11 // pred_region
        %p195 = scmp.lt.s32.totalorder %s21, 0
        %s196 = scalar_select %p195, %s21, 0
        %s197 = scalar_lea.vmem %s2, %s196
      $region20: #{tpu_custom_call.1} parent=11 // pred_fallthru
        _
      // Predicated region
      $region21: #{tpu_custom_call.1} parent=11 // pred_check
        %p198 = pneg %p137
      $region22: #{tpu_custom_call.1} parent=11 // pred_check_branch
        %200 = sbr.rel (%p198) target = $region24
      $region23: #{tpu_custom_call.1} parent=11 // pred_region
        %p201 = scmp.lt.s32.totalorder %s21, 0
        %s202 = scalar_select %p201, %s21, 0
        %s203 = scalar_lea.vmem %s3, %s202
      $region24: #{tpu_custom_call.1} parent=11 // pred_fallthru
        _
    $region12: #{tpu_custom_call.1} parent=5 // pred_fallthru
      _
    %p204 = scmp.lt.s32.totalorder %s10, 2
    // Predicated region
    $region25: #{tpu_custom_call.1} parent=5 // pred_check
      %p205 = pneg %p204
    $region26: #{tpu_custom_call.1} parent=5 // pred_check_branch
      %207 = sbr.rel (%p205) target = $region28
    $region27: #{tpu_custom_call.1} parent=5 // pred_region
      // Predicated region
      $region29: #{tpu_custom_call.1} parent=27 // pred_check
        %p208 = pneg %p51
      $region30: #{tpu_custom_call.1} parent=27 // pred_check_branch
        %210 = sbr.rel (%p208) target = $region32
      $region31: #{tpu_custom_call.1} parent=27 // pred_region
        %s211 = smul.u32 19, %s17
        %p212 = scmp.lt.s32.totalorder %s211, 37
        %s213 = scalar_select %p212, %s211, 37
        %p214 = scmp.lt.s32.totalorder %s19, 0
        %s215 = scalar_select %p214, %s19, 0
        %s216 = sadd.s32 %s215, %s213
        %s217 = smul.addr %s216, 8
        %s218 = scalar_lea.vmem %s0, %s217
        %s219 = smul.u32 19, %s17
      $region32: #{tpu_custom_call.1} parent=27 // pred_fallthru
        _
    $region28: #{tpu_custom_call.1} parent=5 // pred_fallthru
      _
    %p220 = scmp.le.s32.totalorder 1, %s10
    %p221 = scmp.lt.s32.totalorder %s10, 3
    %p222 = pnand %p220, %p221
    %p223 = pneg %p222
    // Predicated region
    $region33: #{tpu_custom_call.1} parent=5 // pred_check
      _
    $region34: #{tpu_custom_call.1} parent=5 // pred_check_branch
      %225 = sbr.rel (%p222) target = $region36
    $region35: #{tpu_custom_call.1} parent=5 // pred_region
      %s226 = ssub.s32 %s10, 1
      %s227 = smul.u32 19, %s20
      %p228 = scmp.lt.s32.totalorder %s227, 37
      %s229 = scalar_select %p228, %s227, 37
      %p230 = scmp.lt.s32.totalorder %s22, 0
      %s231 = scalar_select %p230, %s22, 0
      %s232 = sadd.s32 %s231, %s229
      %s233 = smul.addr %s232, 8
      %s234 = scalar_lea.vmem %s0, %s233
      %p235 = pneg %p57
      %p236 = pneg %p54
      %s237 = smul.u32 2, %s22
      %p238 = scmp.lt.s32.totalorder %s237, 1
      %s239 = scalar_select %p238, %s237, 1
      %p240 = scmp.lt.s32.totalorder %s21, 0
      %s241 = scalar_select %p240, %s21, 0
      %s242 = sadd.s32 %s241, %s239
      %s243 = smul.addr %s242, 8
      %s244 = scalar_lea.vmem %s1, %s243
      %p245 = pneg %p85
      %p246 = pneg %p82
      %p247 = scmp.lt.s32.totalorder %s21, 0
      %s248 = scalar_select %p247, %s21, 0
      %s249 = scalar_lea.vmem %s2, %s248
      %p250 = pneg %p111
      %p251 = pneg %p108
      %p252 = scmp.lt.s32.totalorder %s21, 0
      %s253 = scalar_select %p252, %s21, 0
      %s254 = scalar_lea.vmem %s3, %s253
      %p255 = pneg %p137
      %p256 = pneg %p134
      %p257 = pneg %p165
      %p258 = pneg %p162
      %s259 = smul.u32 19, %s20
      %p260 = scmp.lt.s32.totalorder %s259, 37
      %s261 = scalar_select %p260, %s259, 37
      %p262 = scmp.lt.s32.totalorder %s21, 0
      %s263 = scalar_select %p262, %s21, 0
      %s264 = sadd.s32 %s263, %s261
      %s265 = smul.addr %s264, 8
      %s266 = scalar_lea.vmem %s4, %s265
      %s267 = smul.u32 19, %s20
      %p268 = scmp.lt.s32.totalorder %s267, 37
      %s269 = scalar_select %p268, %s267, 37
      %p270 = scmp.lt.s32.totalorder %s22, 0
      %s271 = scalar_select %p270, %s22, 0
      %s272 = sadd.s32 %s271, %s269
      %s273 = smul.addr %s272, 8
      %s274 = scalar_lea.vmem %s0, %s273
      %s275 = smul.u32 19, %s20
      %s276 = smul.u32 2, %s22
      %p277 = scmp.lt.s32.totalorder %s276, 1
      %s278 = scalar_select %p277, %s276, 1
      %p279 = scmp.lt.s32.totalorder %s21, 0
      %s280 = scalar_select %p279, %s21, 0
      %s281 = sadd.s32 %s280, %s278
      %s282 = smul.addr %s281, 8
      %s283 = scalar_lea.vmem %s1, %s282
      %s284 = smul.u32 2, %s22
      %p285 = scmp.lt.s32.totalorder %s21, 0
      %s286 = scalar_select %p285, %s21, 0
      %s287 = scalar_lea.vmem %s2, %s286
      %p288 = scmp.lt.s32.totalorder %s21, 0
      %s289 = scalar_select %p288, %s21, 0
      %s290 = scalar_lea.vmem %s3, %s289
      %s291 = smul.u32 19, %s20
      %p292 = scmp.lt.s32.totalorder %s291, 37
      %s293 = scalar_select %p292, %s291, 37
      %p294 = scmp.lt.s32.totalorder %s21, 0
      %s295 = scalar_select %p294, %s21, 0
      %s296 = sadd.s32 %s295, %s293
      %s297 = smul.addr %s296, 8
      %s298 = scalar_lea.vmem %s4, %s297
      %s299 = smul.u32 19, %s20
      %p300 = scmp.eq.s32.totalorder %s22, 0
      // Predicated region
      $region37: #{tpu_custom_call.1} parent=35 // pred_check
        %p301 = pneg %p300
      $region38: #{tpu_custom_call.1} parent=35 // pred_check_branch
        %303 = sbr.rel (%p301) target = $region40
      $region39: #{tpu_custom_call.1} parent=35 // pred_region
        %vm304 = vcmask 785408
        %305 = vst.msk [vmem:[#allocation2] sm:$0xff] %vm304, 0.0
        %306 = vst.msk [vmem:[#allocation2 + $0x8] sm:$0xff] %vm304, 0.0
        %307 = vst.msk [vmem:[#allocation2 + $0x10] sm:$0xff] %vm304, 0.0
        %308 = vst.msk [vmem:[#allocation2 + $0x18] sm:$0xff] %vm304, 0.0
        %309 = vst.msk [vmem:[#allocation2 + $0x20] sm:$0xff] %vm304, 0.0
        %310 = vst.msk [vmem:[#allocation2 + $0x28] sm:$0xff] %vm304, 0.0
        %311 = vst.msk [vmem:[#allocation2 + $0x30] sm:$0xff] %vm304, 0.0
        %312 = vst.msk [vmem:[#allocation2 + $0x38] sm:$0xff] %vm304, 0.0
        %313 = vst.msk [vmem:[#allocation2 + $0x40] sm:$0xff] %vm304, 0.0
        %314 = vst.msk [vmem:[#allocation2 + $0x48] sm:$0xff] %vm304, 0.0
        %315 = vst.msk [vmem:[#allocation2 + $0x50] sm:$0xff] %vm304, 0.0
        %316 = vst.msk [vmem:[#allocation2 + $0x58] sm:$0xff] %vm304, 0.0
        %317 = vst.msk [vmem:[#allocation2 + $0x60] sm:$0xff] %vm304, 0.0
        %318 = vst.msk [vmem:[#allocation2 + $0x68] sm:$0xff] %vm304, 0.0
        %319 = vst.msk [vmem:[#allocation2 + $0x70] sm:$0xff] %vm304, 0.0
        %320 = vst.msk [vmem:[#allocation2 + $0x78] sm:$0xff] %vm304, 0.0
        %321 = vst.msk [vmem:[#allocation2 + $0x80] sm:$0xff] %vm304, 0.0
        %322 = vst.msk [vmem:[#allocation2 + $0x88] sm:$0xff] %vm304, 0.0
        %323 = vst.msk [vmem:[#allocation2 + $0x90] sm:$0xff] %vm304, 0.0
      $region40: #{tpu_custom_call.1} parent=35 // pred_fallthru
        _
      %v324 = vld [vmem:[#allocation2] sm:$0xff]
      %v325 = vld [vmem:[#allocation2 + $0x8] sm:$0xff]
      %v326 = vld [vmem:[#allocation2 + $0x10] sm:$0xff]
      %v327 = vld [vmem:[#allocation2 + $0x18] sm:$0xff]
      %v328 = vld [vmem:[#allocation2 + $0x20] sm:$0xff]
      %v329 = vld [vmem:[#allocation2 + $0x28] sm:$0xff]
      %v330 = vld [vmem:[#allocation2 + $0x30] sm:$0xff]
      %v331 = vld [vmem:[#allocation2 + $0x38] sm:$0xff]
      %v332 = vld [vmem:[#allocation2 + $0x40] sm:$0xff]
      %v333 = vld [vmem:[#allocation2 + $0x48] sm:$0xff]
      %v334 = vld [vmem:[#allocation2 + $0x50] sm:$0xff]
      %v335 = vld [vmem:[#allocation2 + $0x58] sm:$0xff]
      %v336 = vld [vmem:[#allocation2 + $0x60] sm:$0xff]
      %v337 = vld [vmem:[#allocation2 + $0x68] sm:$0xff]
      %v338 = vld [vmem:[#allocation2 + $0x70] sm:$0xff]
      %v339 = vld [vmem:[#allocation2 + $0x78] sm:$0xff]
      %v340 = vld [vmem:[#allocation2 + $0x80] sm:$0xff]
      %v341 = vld [vmem:[#allocation2 + $0x88] sm:$0xff]
      %v342 = vld [vmem:[#allocation2 + $0x90] sm:$0xff]
      %v343 = vld [vmem:[%s274] sm:$0xff]
      %v344 = vld [vmem:[%s274 + $0x8] sm:$0xff]
      %v345 = vld [vmem:[%s274 + $0x10] sm:$0xff]
      %v346 = vld [vmem:[%s274 + $0x18] sm:$0xff]
      %v347 = vld [vmem:[%s274 + $0x20] sm:$0xff]
      %v348 = vld [vmem:[%s274 + $0x28] sm:$0xff]
      %v349 = vld [vmem:[%s274 + $0x30] sm:$0xff]
      %v350 = vld [vmem:[%s274 + $0x38] sm:$0xff]
      %v351 = vld [vmem:[%s274 + $0x40] sm:$0xff]
      %v352 = vld [vmem:[%s274 + $0x48] sm:$0xff]
      %v353 = vld [vmem:[%s274 + $0x50] sm:$0xff]
      %v354 = vld [vmem:[%s274 + $0x58] sm:$0xff]
      %v355 = vld [vmem:[%s274 + $0x60] sm:$0xff]
      %v356 = vld [vmem:[%s274 + $0x68] sm:$0xff]
      %v357 = vld [vmem:[%s274 + $0x70] sm:$0xff]
      %v358 = vld [vmem:[%s274 + $0x78] sm:$0xff]
      %v359 = vld [vmem:[%s274 + $0x80] sm:$0xff]
      %v360 = vld [vmem:[%s274 + $0x88] sm:$0xff]
      %v361 = vld [vmem:[%s274 + $0x90] sm:$0xff]
      %v362 = vld [vmem:[%s283] sm:$0xff]
      %v363 = vld [vmem:[%s283 + $0x8] sm:$0xff]
      %vm364 = vcmask 130048
      %v366 = vsel %vm364, %v343, 0
      %v369 = vsel %vm364, %v344, 0
      %v372 = vsel %vm364, %v345, 0
      %v375 = vsel %vm364, %v346, 0
      %v378 = vsel %vm364, %v347, 0
      %v381 = vsel %vm364, %v348, 0
      %v384 = vsel %vm364, %v349, 0
      %v387 = vsel %vm364, %v350, 0
      %v390 = vsel %vm364, %v351, 0
      %v393 = vsel %vm364, %v352, 0
      %v396 = vsel %vm364, %v353, 0
      %v399 = vsel %vm364, %v354, 0
      %v402 = vsel %vm364, %v355, 0
      %v405 = vsel %vm364, %v356, 0
      %v408 = vsel %vm364, %v357, 0
      %v411 = vsel %vm364, %v358, 0
      %v414 = vsel %vm364, %v359, 0
      %v417 = vsel %vm364, %v360, 0
      %v420 = vsel %vm364, %v361, 0
      %422 = vmatprep.subr.mxu0 0.0
      %423 = vmatpush1.msra.mxu0 %v362
      %424 = vmatprep.subr.mxu0 0.0
      %425 = vmatpush1.msra.mxu0 %v363
      %426 = vmatprep.subr.mxu0 0.0
      %427 = vmatpush1.msra.mxu0 0.0
      %428 = vmatprep.subr.mxu0 0.0
      %429 = vmatpush1.msra.mxu0 0.0
      %430 = vmatprep.subr.mxu0 0.0
      %431 = vmatpush1.msra.mxu0 0.0
      %432 = vmatprep.subr.mxu0 0.0
      %433 = vmatpush1.msra.mxu0 0.0
      %434 = vmatprep.subr.mxu0 0.0
      %435 = vmatpush1.msra.mxu0 0.0
      %436 = vmatprep.subr.mxu0 0.0
      %437 = vmatpush1.msra.mxu0 0.0
      %438 = vmatprep.subr.mxu0 0.0
      %439 = vmatpush1.msra.mxu0 0.0
      %440 = vmatprep.subr.mxu0 0.0
      %441 = vmatpush1.msra.mxu0 0.0
      %442 = vmatprep.subr.mxu0 0.0
      %443 = vmatpush1.msra.mxu0 0.0
      %444 = vmatprep.subr.mxu0 0.0
      %445 = vmatpush1.msra.mxu0 0.0
      %446 = vmatprep.subr.mxu0 0.0
      %447 = vmatpush1.msra.mxu0 0.0
      %448 = vmatprep.subr.mxu0 0.0
      %449 = vmatpush1.msra.mxu0 0.0
      %450 = vmatprep.subr.mxu0 0.0
      %451 = vmatpush1.msra.mxu0 0.0
      %452 = vmatprep.subr.mxu0 0.0
      %453 = vmatpush1.msra.mxu0 0.0
      %454 = vmatprep.subr.mxu0 0.0
      %455 = vmatpush1.msra.mxu0 0.0
      %456 = vmatprep.subr.mxu0 0.0
      %457 = vmatpush1.msra.mxu0 0.0
      %458 = vmatprep.subr.mxu0 0.0
      %459 = vmatpush1.msra.mxu0 0.0
      %460 = vmatprep.subr.mxu0 0.0
      %461 = vmatpush1.msra.mxu0 0.0
      %462 = vmatprep.subr.mxu0 0.0
      %463 = vmatpush1.msra.mxu0 0.0
      %464 = vmatprep.subr.mxu0 0.0
      %465 = vmatpush1.msra.mxu0 0.0
      %466 = vmatprep.subr.mxu0 0.0
      %467 = vmatpush1.msra.mxu0 0.0
      %468 = vmatprep.subr.mxu0 0.0
      %469 = vmatpush1.msra.mxu0 0.0
      %470 = vmatprep.subr.mxu0 0.0
      %471 = vmatpush1.msra.mxu0 0.0
      %472 = vmatprep.subr.mxu0 0.0
      %473 = vmatpush1.msra.mxu0 0.0
      %474 = vmatprep.subr.mxu0 0.0
      %475 = vmatpush1.msra.mxu0 0.0
      %476 = vmatprep.subr.mxu0 0.0
      %477 = vmatpush1.msra.mxu0 0.0
      %478 = vmatprep.subr.mxu0 0.0
      %479 = vmatpush1.msra.mxu0 0.0
      %480 = vmatprep.subr.mxu0 0.0
      %481 = vmatpush1.msra.mxu0 0.0
      %482 = vmatprep.subr.mxu0 0.0
      %483 = vmatpush1.msra.mxu0 0.0
      %484 = vmatprep.subr.mxu0 0.0
      %485 = vmatpush1.msra.mxu0 0.0
      %486 = vmatprep.mubr.f32.mxu0 0.0
      %487 = vmatmul.mubr.f32.gmra.mrb[0].mxu0 %v366
      %v488 = vpop.f32.mrb[0].mxu0
      %v489 = vadd.f32 0.0, %v488
      %v490 = vpop.f32.mrb[0].mxu0
      %491 = vmatprep.mubr.f32.mxu0 0.0
      %492 = vmatmul.mubr.f32.gmra.mrb[0].mxu0 %v369
      %v493 = vpop.f32.mrb[0].mxu0
      %v494 = vadd.f32 0.0, %v493
      %v495 = vpop.f32.mrb[0].mxu0
      %496 = vmatprep.mubr.f32.mxu0 0.0
      %497 = vmatmul.mubr.f32.gmra.mrb[0].mxu0 %v372
      %v498 = vpop.f32.mrb[0].mxu0
      %v499 = vadd.f32 0.0, %v498
      %v500 = vpop.f32.mrb[0].mxu0
      %501 = vmatprep.mubr.f32.mxu0 0.0
      %502 = vmatmul.mubr.f32.gmra.mrb[0].mxu0 %v375
      %v503 = vpop.f32.mrb[0].mxu0
      %v504 = vadd.f32 0.0, %v503
      %v505 = vpop.f32.mrb[0].mxu0
      %506 = vmatprep.mubr.f32.mxu0 0.0
      %507 = vmatmul.mubr.f32.gmra.mrb[0].mxu0 %v378
      %v508 = vpop.f32.mrb[0].mxu0
      %v509 = vadd.f32 0.0, %v508
      %v510 = vpop.f32.mrb[0].mxu0
      %511 = vmatprep.mubr.f32.mxu0 0.0
      %512 = vmatmul.mubr.f32.gmra.mrb[0].mxu0 %v381
      %v513 = vpop.f32.mrb[0].mxu0
      %v514 = vadd.f32 0.0, %v513
      %v515 = vpop.f32.mrb[0].mxu0
      %516 = vmatprep.mubr.f32.mxu0 0.0
      %517 = vmatmul.mubr.f32.gmra.mrb[0].mxu0 %v384
      %v518 = vpop.f32.mrb[0].mxu0
      %v519 = vadd.f32 0.0, %v518
      %v520 = vpop.f32.mrb[0].mxu0
      %521 = vmatprep.mubr.f32.mxu0 0.0
      %522 = vmatmul.mubr.f32.gmra.mrb[0].mxu0 %v387
      %v523 = vpop.f32.mrb[0].mxu0
      %v524 = vadd.f32 0.0, %v523
      %v525 = vpop.f32.mrb[0].mxu0
      %526 = vmatprep.mubr.f32.mxu0 0.0
      %527 = vmatmul.mubr.f32.gmra.mrb[0].mxu0 %v390
      %v528 = vpop.f32.mrb[0].mxu0
      %v529 = vadd.f32 0.0, %v528
      %v530 = vpop.f32.mrb[0].mxu0
      %531 = vmatprep.mubr.f32.mxu0 0.0
      %532 = vmatmul.mubr.f32.gmra.mrb[0].mxu0 %v393
      %v533 = vpop.f32.mrb[0].mxu0
      %v534 = vadd.f32 0.0, %v533
      %v535 = vpop.f32.mrb[0].mxu0
      %536 = vmatprep.mubr.f32.mxu0 0.0
      %537 = vmatmul.mubr.f32.gmra.mrb[0].mxu0 %v396
      %v538 = vpop.f32.mrb[0].mxu0
      %v539 = vadd.f32 0.0, %v538
      %v540 = vpop.f32.mrb[0].mxu0
      %541 = vmatprep.mubr.f32.mxu0 0.0
      %542 = vmatmul.mubr.f32.gmra.mrb[0].mxu0 %v399
      %v543 = vpop.f32.mrb[0].mxu0
      %v544 = vadd.f32 0.0, %v543
      %v545 = vpop.f32.mrb[0].mxu0
      %546 = vmatprep.mubr.f32.mxu0 0.0
      %547 = vmatmul.mubr.f32.gmra.mrb[0].mxu0 %v402
      %v548 = vpop.f32.mrb[0].mxu0
      %v549 = vadd.f32 0.0, %v548
      %v550 = vpop.f32.mrb[0].mxu0
      %551 = vmatprep.mubr.f32.mxu0 0.0
      %552 = vmatmul.mubr.f32.gmra.mrb[0].mxu0 %v405
      %v553 = vpop.f32.mrb[0].mxu0
      %v554 = vadd.f32 0.0, %v553
      %v555 = vpop.f32.mrb[0].mxu0
      %556 = vmatprep.mubr.f32.mxu0 0.0
      %557 = vmatmul.mubr.f32.gmra.mrb[0].mxu0 %v408
      %v558 = vpop.f32.mrb[0].mxu0
      %v559 = vadd.f32 0.0, %v558
      %v560 = vpop.f32.mrb[0].mxu0
      %561 = vmatprep.mubr.f32.mxu0 0.0
      %562 = vmatmul.mubr.f32.gmra.mrb[0].mxu0 %v411
      %v563 = vpop.f32.mrb[0].mxu0
      %v564 = vadd.f32 0.0, %v563
      %v565 = vpop.f32.mrb[0].mxu0
      %566 = vmatprep.mubr.f32.mxu0 0.0
      %567 = vmatmul.mubr.f32.gmra.mrb[0].mxu0 %v414
      %v568 = vpop.f32.mrb[0].mxu0
      %v569 = vadd.f32 0.0, %v568
      %v570 = vpop.f32.mrb[0].mxu0
      %571 = vmatprep.mubr.f32.mxu0 0.0
      %572 = vmatmul.mubr.f32.gmra.mrb[0].mxu0 %v417
      %v573 = vpop.f32.mrb[0].mxu0
      %v574 = vadd.f32 0.0, %v573
      %v575 = vpop.f32.mrb[0].mxu0
      %576 = vmatprep.mubr.f32.mxu0 0.0
      %577 = vmatmul.mubr.f32.gmra.mrb[0].mxu0 %v420
      %v578 = vpop.f32.mrb[0].mxu0
      %v579 = vadd.f32 0.0, %v578
      %v580 = vpop.f32.mrb[0].mxu0
      %581 = vdwg.mxu0
      %v582 = vadd.f32 %v324, %v489
      %v583 = vadd.f32 %v325, %v494
      %v584 = vadd.f32 %v326, %v499
      %v585 = vadd.f32 %v327, %v504
      %v586 = vadd.f32 %v328, %v509
      %v587 = vadd.f32 %v329, %v514
      %v588 = vadd.f32 %v330, %v519
      %v589 = vadd.f32 %v331, %v524
      %v590 = vadd.f32 %v332, %v529
      %v591 = vadd.f32 %v333, %v534
      %v592 = vadd.f32 %v334, %v539
      %v593 = vadd.f32 %v335, %v544
      %v594 = vadd.f32 %v336, %v549
      %v595 = vadd.f32 %v337, %v554
      %v596 = vadd.f32 %v338, %v559
      %v597 = vadd.f32 %v339, %v564
      %v598 = vadd.f32 %v340, %v569
      %v599 = vadd.f32 %v341, %v574
      %v600 = vadd.f32 %v342, %v579
      %vm601 = vcmask 785408
      %602 = vst.msk [vmem:[#allocation2] sm:$0xff] %vm601, %v582
      %603 = vst.msk [vmem:[#allocation2 + $0x8] sm:$0xff] %vm601, %v583
      %604 = vst.msk [vmem:[#allocation2 + $0x10] sm:$0xff] %vm601, %v584
      %605 = vst.msk [vmem:[#allocation2 + $0x18] sm:$0xff] %vm601, %v585
      %606 = vst.msk [vmem:[#allocation2 + $0x20] sm:$0xff] %vm601, %v586
      %607 = vst.msk [vmem:[#allocation2 + $0x28] sm:$0xff] %vm601, %v587
      %608 = vst.msk [vmem:[#allocation2 + $0x30] sm:$0xff] %vm601, %v588
      %609 = vst.msk [vmem:[#allocation2 + $0x38] sm:$0xff] %vm601, %v589
      %610 = vst.msk [vmem:[#allocation2 + $0x40] sm:$0xff] %vm601, %v590
      %611 = vst.msk [vmem:[#allocation2 + $0x48] sm:$0xff] %vm601, %v591
      %612 = vst.msk [vmem:[#allocation2 + $0x50] sm:$0xff] %vm601, %v592
      %613 = vst.msk [vmem:[#allocation2 + $0x58] sm:$0xff] %vm601, %v593
      %614 = vst.msk [vmem:[#allocation2 + $0x60] sm:$0xff] %vm601, %v594
      %615 = vst.msk [vmem:[#allocation2 + $0x68] sm:$0xff] %vm601, %v595
      %616 = vst.msk [vmem:[#allocation2 + $0x70] sm:$0xff] %vm601, %v596
      %617 = vst.msk [vmem:[#allocation2 + $0x78] sm:$0xff] %vm601, %v597
      %618 = vst.msk [vmem:[#allocation2 + $0x80] sm:$0xff] %vm601, %v598
      %619 = vst.msk [vmem:[#allocation2 + $0x88] sm:$0xff] %vm601, %v599
      %620 = vst.msk [vmem:[#allocation2 + $0x90] sm:$0xff] %vm601, %v600
      // Predicated region
      $region41: #{tpu_custom_call.1} parent=35 // pred_check
        %p621 = pneg %p300
      $region42: #{tpu_custom_call.1} parent=35 // pred_check_branch
        %623 = sbr.rel (%p621) target = $region44
      $region43: #{tpu_custom_call.1} parent=35 // pred_region
        %v624 = vld [vmem:[#allocation2] sm:$0xff]
        %v625 = vld [vmem:[#allocation2 + $0x8] sm:$0xff]
        %v626 = vld [vmem:[#allocation2 + $0x10] sm:$0xff]
        %v627 = vld [vmem:[#allocation2 + $0x18] sm:$0xff]
        %v628 = vld [vmem:[#allocation2 + $0x20] sm:$0xff]
        %v629 = vld [vmem:[#allocation2 + $0x28] sm:$0xff]
        %v630 = vld [vmem:[#allocation2 + $0x30] sm:$0xff]
        %v631 = vld [vmem:[#allocation2 + $0x38] sm:$0xff]
        %v632 = vld [vmem:[#allocation2 + $0x40] sm:$0xff]
        %v633 = vld [vmem:[#allocation2 + $0x48] sm:$0xff]
        %v634 = vld [vmem:[#allocation2 + $0x50] sm:$0xff]
        %v635 = vld [vmem:[#allocation2 + $0x58] sm:$0xff]
        %v636 = vld [vmem:[#allocation2 + $0x60] sm:$0xff]
        %v637 = vld [vmem:[#allocation2 + $0x68] sm:$0xff]
        %v638 = vld [vmem:[#allocation2 + $0x70] sm:$0xff]
        %v639 = vld [vmem:[#allocation2 + $0x78] sm:$0xff]
        %v640 = vld [vmem:[#allocation2 + $0x80] sm:$0xff]
        %v641 = vld [vmem:[#allocation2 + $0x88] sm:$0xff]
        %v642 = vld [vmem:[#allocation2 + $0x90] sm:$0xff]
        %v643 = vld [vmem:[%s287] sm:$0x1]
        %v645 = vlaneseq
        %v646 = vshrl.u32 %v645, 7
        %v647 = vsub.s32 0, %v646
        %v648 = vrot.slane %v643, %v647
        %v650 = vmul.f32 %v624, %v648
        %v651 = vmul.f32 %v625, %v648
        %v652 = vmul.f32 %v626, %v648
        %v653 = vmul.f32 %v627, %v648
        %v654 = vmul.f32 %v628, %v648
        %v655 = vmul.f32 %v629, %v648
        %v656 = vmul.f32 %v630, %v648
        %v657 = vmul.f32 %v631, %v648
        %v658 = vmul.f32 %v632, %v648
        %v659 = vmul.f32 %v633, %v648
        %v660 = vmul.f32 %v634, %v648
        %v661 = vmul.f32 %v635, %v648
        %v662 = vmul.f32 %v636, %v648
        %v663 = vmul.f32 %v637, %v648
        %v664 = vmul.f32 %v638, %v648
        %v665 = vmul.f32 %v639, %v648
        %v666 = vmul.f32 %v640, %v648
        %v667 = vmul.f32 %v641, %v648
        %v668 = vmul.f32 %v642, %v648
        %v669 = vld [vmem:[%s290] sm:$0x1]
        %v671 = vlaneseq
        %v672 = vshrl.u32 %v671, 7
        %v673 = vsub.s32 0, %v672
        %v674 = vrot.slane %v669, %v673
        %v676 = vadd.f32 %v650, %v674
        %v677 = vadd.f32 %v651, %v674
        %v678 = vadd.f32 %v652, %v674
        %v679 = vadd.f32 %v653, %v674
        %v680 = vadd.f32 %v654, %v674
        %v681 = vadd.f32 %v655, %v674
        %v682 = vadd.f32 %v656, %v674
        %v683 = vadd.f32 %v657, %v674
        %v684 = vadd.f32 %v658, %v674
        %v685 = vadd.f32 %v659, %v674
        %v686 = vadd.f32 %v660, %v674
        %v687 = vadd.f32 %v661, %v674
        %v688 = vadd.f32 %v662, %v674
        %v689 = vadd.f32 %v663, %v674
        %v690 = vadd.f32 %v664, %v674
        %v691 = vadd.f32 %v665, %v674
        %v692 = vadd.f32 %v666, %v674
        %v693 = vadd.f32 %v667, %v674
        %v694 = vadd.f32 %v668, %v674
        %695 = vst.msk [vmem:[%s298] sm:$0xff] %vm601, %v676
        %696 = vst.msk [vmem:[%s298 + $0x8] sm:$0xff] %vm601, %v677
        %697 = vst.msk [vmem:[%s298 + $0x10] sm:$0xff] %vm601, %v678
        %698 = vst.msk [vmem:[%s298 + $0x18] sm:$0xff] %vm601, %v679
        %699 = vst.msk [vmem:[%s298 + $0x20] sm:$0xff] %vm601, %v680
        %700 = vst.msk [vmem:[%s298 + $0x28] sm:$0xff] %vm601, %v681
        %701 = vst.msk [vmem:[%s298 + $0x30] sm:$0xff] %vm601, %v682
        %702 = vst.msk [vmem:[%s298 + $0x38] sm:$0xff] %vm601, %v683
        %703 = vst.msk [vmem:[%s298 + $0x40] sm:$0xff] %vm601, %v684
        %704 = vst.msk [vmem:[%s298 + $0x48] sm:$0xff] %vm601, %v685
        %705 = vst.msk [vmem:[%s298 + $0x50] sm:$0xff] %vm601, %v686
        %706 = vst.msk [vmem:[%s298 + $0x58] sm:$0xff] %vm601, %v687
        %707 = vst.msk [vmem:[%s298 + $0x60] sm:$0xff] %vm601, %v688
        %708 = vst.msk [vmem:[%s298 + $0x68] sm:$0xff] %vm601, %v689
        %709 = vst.msk [vmem:[%s298 + $0x70] sm:$0xff] %vm601, %v690
        %710 = vst.msk [vmem:[%s298 + $0x78] sm:$0xff] %vm601, %v691
        %711 = vst.msk [vmem:[%s298 + $0x80] sm:$0xff] %vm601, %v692
        %712 = vst.msk [vmem:[%s298 + $0x88] sm:$0xff] %vm601, %v693
        %713 = vst.msk [vmem:[%s298 + $0x90] sm:$0xff] %vm601, %v694
      $region44: #{tpu_custom_call.1} parent=35 // pred_fallthru
        _
      %s714 = smul.u32 19, %s20
      %p715 = scmp.lt.s32.totalorder %s714, 37
      %s716 = scalar_select %p715, %s714, 37
      %p717 = scmp.lt.s32.totalorder %s21, 0
      %s718 = scalar_select %p717, %s21, 0
      %s719 = sadd.s32 %s718, %s716
      %s720 = smul.addr %s719, 8
      %s721 = scalar_lea.vmem %s4, %s720
      // Predicated region
      $region45: #{tpu_custom_call.1} parent=35 // pred_check
        %p722 = pneg %p162
      $region46: #{tpu_custom_call.1} parent=35 // pred_check_branch
        %724 = sbr.rel (%p722) target = $region48
      $region47: #{tpu_custom_call.1} parent=35 // pred_region
        %s725 = smul.u32 19, %s20
      $region48: #{tpu_custom_call.1} parent=35 // pred_fallthru
        _
    $region36: #{tpu_custom_call.1} parent=5 // pred_fallthru
      _
    %p726 = scmp.le.s32.totalorder 2, %s10
    // Predicated region
    $region49: #{tpu_custom_call.1} parent=5 // pred_check
      %p727 = pneg %p726
    $region50: #{tpu_custom_call.1} parent=5 // pred_check_branch
      %729 = sbr.rel (%p727) target = $region52
    $region51: #{tpu_custom_call.1} parent=5 // pred_region
      %s730 = ssub.s32 %s10, 2
      // Predicated region
      $region53: #{tpu_custom_call.1} parent=51 // pred_check
        %p731 = pneg %p168
      $region54: #{tpu_custom_call.1} parent=51 // pred_check_branch
        %733 = sbr.rel (%p731) target = $region56
      $region55: #{tpu_custom_call.1} parent=51 // pred_region
        %s734 = smul.u32 19, %s23
        %p735 = scmp.lt.s32.totalorder %s734, 37
        %s736 = scalar_select %p735, %s734, 37
        %p737 = scmp.lt.s32.totalorder %s24, 0
        %s738 = scalar_select %p737, %s24, 0
        %s739 = sadd.s32 %s738, %s736
        %s740 = smul.addr %s739, 8
        %s741 = scalar_lea.vmem %s4, %s740
      $region56: #{tpu_custom_call.1} parent=51 // pred_fallthru
        _
    $region52: #{tpu_custom_call.1} parent=5 // pred_fallthru
      _
  $region6: #{tpu_custom_call.1} parent=0 // loop_footer
    %s14 = sadd.s32 1, %s10
  $region7: #{tpu_custom_call.1} parent=0 // loop_footer_branch
    %9 = sbr.rel target = $region3
  $region8: #{tpu_custom_call.1} parent=0 // loop_exit
    _

</llo_original>
